<compile_context>
chip_gen: v5e
topology: v5e:2x2
jax: 0.10.0
libtpu: 0.0.40
codegen_flags: <defaults>
</compile_context>

<pallas_src>
import functools

import jax
import jax.numpy as jnp
from jax.experimental import pallas as pl
from jax.experimental.pallas import tpu as pltpu


def _round_up(x, m):
    return ((x + m - 1) // m) * m


def _encoder_kernel(x_ref, w1_ref, b1_ref, w2_ref, b2_ref, wh_ref, bh_ref,
                    out_ref):
    """One batch tile: fc1+ReLU -> fc2+ReLU -> fused heads, lane-dense store."""
    compute_dtype = w1_ref.dtype
    # fc1 + ReLU (MXU matmul, f32 accumulate; bias/ReLU epilogue in f32)
    h1 = jnp.dot(x_ref[...].astype(compute_dtype), w1_ref[...],
                 preferred_element_type=jnp.float32)
    h1 = jnp.maximum(h1 + b1_ref[...], 0.0)
    # fc2 + ReLU
    h2 = jnp.dot(h1.astype(compute_dtype), w2_ref[...],
                 preferred_element_type=jnp.float32)
    h2 = jnp.maximum(h2 + b2_ref[...], 0.0)
    # fused heads: one matmul, one lane-dense (TB, OUT_PAD) store
    out = jnp.dot(h2.astype(compute_dtype), wh_ref[...],
                  preferred_element_type=jnp.float32)
    out_ref[...] = (out + bh_ref[...]).astype(out_ref.dtype)


def pack_params(params, latent_size, compute_dtype=jnp.float32):
    """Fuse + lane-pad the head weights; optionally cast weights to bf16.

    Weights are (in, out) so the kernel computes y = x @ W + b (== torch's
    x @ W_pt.T + b). Biases stay f32 (f32 epilogue on all chips).
    """
    out_pad = _round_up(2 * latent_size, 128)
    wh = jnp.concatenate([params["wmu"], params["wls"]], axis=1)
    bh = jnp.concatenate([params["bmu"], params["bls"]], axis=1)
    wh = jnp.pad(wh, ((0, 0), (0, out_pad - 2 * latent_size)))
    bh = jnp.pad(bh, ((0, 0), (0, out_pad - 2 * latent_size)))
    return dict(
        w1=params["w1"].astype(compute_dtype), b1=params["b1"],
        w2=params["w2"].astype(compute_dtype), b2=params["b2"],
        wh=wh.astype(compute_dtype), bh=bh.astype(jnp.float32),
    )


def encoder_forward(x, packed, latent_size, *, block_b=256):
    """x: (B, 256) float32. packed: output of pack_params. Returns (mu, logsigma)."""
    B, in_dim = x.shape
    out_pad = packed["wh"].shape[1]

    # Batch tiling: TB rows per grid step (>=8, multiple of 8). Pad B up to a
    # multiple of TB; the padded rows are computed but sliced away (cheap).
    TB = min(block_b, _round_up(B, 8))
    Bp = _round_up(B, TB)
    if Bp != B:
        x = jnp.pad(x, ((0, Bp - B), (0, 0)))
    grid = (Bp // TB,)

    args = (x, packed["w1"], packed["b1"], packed["w2"], packed["b2"],
            packed["wh"], packed["bh"])

    resident = lambda shape: pl.BlockSpec(shape, lambda i: (0,) * len(shape))
    in_specs = [
        pl.BlockSpec((TB, in_dim), lambda i: (i, 0)),       # x: streamed by tile
        resident(packed["w1"].shape), resident(packed["b1"].shape),
        resident(packed["w2"].shape), resident(packed["b2"].shape),
        resident(packed["wh"].shape), resident(packed["bh"].shape),
    ]
    out_specs = pl.BlockSpec((TB, out_pad), lambda i: (i, 0))
    out_shape = jax.ShapeDtypeStruct((Bp, out_pad), jnp.float32)

    flops = 2 * Bp * (in_dim * 128 + 128 * 64 + 64 * out_pad)
    bytes_accessed = (x.size * x.dtype.itemsize
                      + sum(packed[k].size * packed[k].dtype.itemsize
                            for k in packed)
                      + Bp * out_pad * 4)
    cost = pl.CostEstimate(flops=flops, transcendentals=0,
                           bytes_accessed=bytes_accessed)

    out = pl.pallas_call(
        _encoder_kernel,
        grid=grid,
        in_specs=in_specs,
        out_specs=out_specs,
        out_shape=out_shape,
        compiler_params=pltpu.CompilerParams(
            dimension_semantics=("parallel",)),
        cost_estimate=cost,
    )(*args)

    mu = out[:B, :latent_size]
    logsigma = out[:B, latent_size:2 * latent_size]
    return mu, logsigma


def init_params(key, latent_size):
    """Deterministic init mimicking torch.nn.Linear (uniform +-1/sqrt(fan_in)).
    Weights kept as (in, out); biases as (1, out)."""
    def linear(key, fan_in, fan_out):
        kw, kb = jax.random.split(key)
        bound = 1.0 / (fan_in ** 0.5)
        w_pt = jax.random.uniform(kw, (fan_out, fan_in), jnp.float32,
                                  minval=-bound, maxval=bound)
        b = jax.random.uniform(kb, (fan_out,), jnp.float32,
                               minval=-bound, maxval=bound)
        return w_pt.T, b.reshape(1, fan_out)

    k1, k2, k3, k4 = jax.random.split(key, 4)
    w1, b1 = linear(k1, 256, 128)
    w2, b2 = linear(k2, 128, 64)
    wmu, bmu = linear(k3, 64, latent_size)
    wls, bls = linear(k4, 64, latent_size)
    return dict(w1=w1, b1=b1, w2=w2, b2=b2,
                wmu=wmu, bmu=bmu, wls=wls, bls=bls)


def reference_forward(x, params):
    h1 = jax.nn.relu(x @ params["w1"] + params["b1"])
    h2 = jax.nn.relu(h1 @ params["w2"] + params["b2"])
    mu = h2 @ params["wmu"] + params["bmu"]
    ls = h2 @ params["wls"] + params["bls"]
    return mu, ls


if __name__ == "__main__":
    key = jax.random.PRNGKey(0)
    kx, kp = jax.random.split(key)

    batch, in_dim, latent_size = 8, 256, 32
    x = jax.random.normal(kx, (batch, in_dim), jnp.float32)
    params = init_params(kp, latent_size)

    # f32 compute for the correctness check; pass compute_dtype=jnp.bfloat16
    # here for the bf16 fast path on v6e/v7x (f32 accumulation is kept).
    packed = pack_params(params, latent_size, compute_dtype=jnp.float32)

    fwd = jax.jit(functools.partial(encoder_forward, latent_size=latent_size))
    mu, logsigma = fwd(x, packed)
    jax.block_until_ready((mu, logsigma))

    mu_ref, ls_ref = reference_forward(x, params)
    assert mu.shape == (batch, latent_size)
    assert logsigma.shape == (batch, latent_size)
    assert jnp.allclose(mu, mu_ref, atol=1e-4, rtol=1e-4)
    assert jnp.allclose(logsigma, ls_ref, atol=1e-4, rtol=1e-4)

    print("KERNEL_OK")
</pallas_src>

<mosaic_0001>
module attributes {stable_mosaic.version = 11 : i64} {
  func.func @_encoder_kernel(%arg0: i32, %arg1: memref<8x256xf32, #tpu.memory_space<vmem>>, %arg2: memref<256x128xf32, #tpu.memory_space<vmem>>, %arg3: memref<1x128xf32, #tpu.memory_space<vmem>>, %arg4: memref<128x64xf32, #tpu.memory_space<vmem>>, %arg5: memref<1x64xf32, #tpu.memory_space<vmem>>, %arg6: memref<64x128xf32, #tpu.memory_space<vmem>>, %arg7: memref<1x128xf32, #tpu.memory_space<vmem>>, %arg8: memref<8x128xf32, #tpu.memory_space<vmem>>) attributes {dimension_semantics = [#tpu.dimension_semantics<parallel>], iteration_bounds = array<i64: 1>, scalar_prefetch = 0 : i64, scratch_operands = 0 : i64, tpu.core_type = #tpu.core_type<tc>, window_params = [{transform_indices = @transform_0, window_bounds = array<i64: 8, 256>}, {pipeline_mode = #tpu.pipeline_mode<synchronous>, transform_indices = @transform_1, window_bounds = array<i64: 256, 128>}, {pipeline_mode = #tpu.pipeline_mode<synchronous>, transform_indices = @transform_2, window_bounds = array<i64: 1, 128>}, {pipeline_mode = #tpu.pipeline_mode<synchronous>, transform_indices = @transform_3, window_bounds = array<i64: 128, 64>}, {pipeline_mode = #tpu.pipeline_mode<synchronous>, transform_indices = @transform_4, window_bounds = array<i64: 1, 64>}, {pipeline_mode = #tpu.pipeline_mode<synchronous>, transform_indices = @transform_5, window_bounds = array<i64: 64, 128>}, {pipeline_mode = #tpu.pipeline_mode<synchronous>, transform_indices = @transform_6, window_bounds = array<i64: 1, 128>}, {transform_indices = @transform_7, window_bounds = array<i64: 8, 128>}]} {
    %c0 = arith.constant 0 : index
    %c0_0 = arith.constant 0 : index
    %0 = vector.load %arg1[%c0, %c0_0] : memref<8x256xf32, #tpu.memory_space<vmem>>, vector<8x256xf32>
    %c0_1 = arith.constant 0 : index
    %c0_2 = arith.constant 0 : index
    %1 = vector.load %arg2[%c0_1, %c0_2] : memref<256x128xf32, #tpu.memory_space<vmem>>, vector<256x128xf32>
    %cst = arith.constant dense<0.000000e+00> : vector<8x128xf32>
    %2 = tpu.matmul %0, %1, %cst {dimension_numbers = #tpu.dot_dimension_numbers<[1], [0], [0], [1], [0, 0, 1, 1], [], []>} : vector<8x256xf32>, vector<256x128xf32>, vector<8x128xf32> -> vector<8x128xf32>
    %c0_3 = arith.constant 0 : index
    %c0_4 = arith.constant 0 : index
    %3 = vector.load %arg3[%c0_3, %c0_4] : memref<1x128xf32, #tpu.memory_space<vmem>>, vector<1x128xf32>
    %4 = vector.broadcast %3 : vector<1x128xf32> to vector<8x128xf32>
    %5 = arith.addf %2, %4 : vector<8x128xf32>
    %cst_5 = arith.constant 0.000000e+00 : f32
    %6 = vector.broadcast %cst_5 : f32 to vector<8x128xf32>
    %7 = arith.maximumf %5, %6 : vector<8x128xf32>
    %c0_6 = arith.constant 0 : index
    %c0_7 = arith.constant 0 : index
    %8 = vector.load %arg4[%c0_6, %c0_7] : memref<128x64xf32, #tpu.memory_space<vmem>>, vector<128x64xf32>
    %cst_8 = arith.constant dense<0.000000e+00> : vector<8x64xf32>
    %9 = tpu.matmul %7, %8, %cst_8 {dimension_numbers = #tpu.dot_dimension_numbers<[1], [0], [0], [1], [0, 0, 1, 1], [], []>} : vector<8x128xf32>, vector<128x64xf32>, vector<8x64xf32> -> vector<8x64xf32>
    %c0_9 = arith.constant 0 : index
    %c0_10 = arith.constant 0 : index
    %10 = vector.load %arg5[%c0_9, %c0_10] : memref<1x64xf32, #tpu.memory_space<vmem>>, vector<1x64xf32>
    %11 = vector.broadcast %10 : vector<1x64xf32> to vector<8x64xf32>
    %12 = arith.addf %9, %11 : vector<8x64xf32>
    %cst_11 = arith.constant 0.000000e+00 : f32
    %13 = vector.broadcast %cst_11 : f32 to vector<8x64xf32>
    %14 = arith.maximumf %12, %13 : vector<8x64xf32>
    %c0_12 = arith.constant 0 : index
    %c0_13 = arith.constant 0 : index
    %15 = vector.load %arg6[%c0_12, %c0_13] : memref<64x128xf32, #tpu.memory_space<vmem>>, vector<64x128xf32>
    %cst_14 = arith.constant dense<0.000000e+00> : vector<8x128xf32>
    %16 = tpu.matmul %14, %15, %cst_14 {dimension_numbers = #tpu.dot_dimension_numbers<[1], [0], [0], [1], [0, 0, 1, 1], [], []>} : vector<8x64xf32>, vector<64x128xf32>, vector<8x128xf32> -> vector<8x128xf32>
    %c0_15 = arith.constant 0 : index
    %c0_16 = arith.constant 0 : index
    %17 = vector.load %arg7[%c0_15, %c0_16] : memref<1x128xf32, #tpu.memory_space<vmem>>, vector<1x128xf32>
    %18 = vector.broadcast %17 : vector<1x128xf32> to vector<8x128xf32>
    %19 = arith.addf %16, %18 : vector<8x128xf32>
    %c0_17 = arith.constant 0 : index
    %c0_18 = arith.constant 0 : index
    %20 = vector.load %arg8[%c0_17, %c0_18] : memref<8x128xf32, #tpu.memory_space<vmem>>, vector<8x128xf32>
    tpu.vector_store %arg8[%c0_17, %c0_18], %19 {strides = array<i32>} : memref<8x128xf32, #tpu.memory_space<vmem>>, vector<8x128xf32>,
    return
  }
  func.func @transform_0(%arg0: i32) -> (i32, i32) {
    %c0_i32 = arith.constant 0 : i32
    %c0_i32_0 = arith.constant 0 : i32
    return %arg0, %c0_i32 : i32, i32
  }
  func.func @transform_1(%arg0: i32) -> (i32, i32) {
    %c0_i32 = arith.constant 0 : i32
    %c0_i32_0 = arith.constant 0 : i32
    %c0_i32_1 = arith.constant 0 : i32
    return %c0_i32, %c0_i32_0 : i32, i32
  }
  func.func @transform_2(%arg0: i32) -> (i32, i32) {
    %c0_i32 = arith.constant 0 : i32
    %c0_i32_0 = arith.constant 0 : i32
    %c0_i32_1 = arith.constant 0 : i32
    return %c0_i32, %c0_i32_0 : i32, i32
  }
  func.func @transform_3(%arg0: i32) -> (i32, i32) {
    %c0_i32 = arith.constant 0 : i32
    %c0_i32_0 = arith.constant 0 : i32
    %c0_i32_1 = arith.constant 0 : i32
    return %c0_i32, %c0_i32_0 : i32, i32
  }
  func.func @transform_4(%arg0: i32) -> (i32, i32) {
    %c0_i32 = arith.constant 0 : i32
    %c0_i32_0 = arith.constant 0 : i32
    %c0_i32_1 = arith.constant 0 : i32
    return %c0_i32, %c0_i32_0 : i32, i32
  }
  func.func @transform_5(%arg0: i32) -> (i32, i32) {
    %c0_i32 = arith.constant 0 : i32
    %c0_i32_0 = arith.constant 0 : i32
    %c0_i32_1 = arith.constant 0 : i32
    return %c0_i32, %c0_i32_0 : i32, i32
  }
  func.func @transform_6(%arg0: i32) -> (i32, i32) {
    %c0_i32 = arith.constant 0 : i32
    %c0_i32_0 = arith.constant 0 : i32
    %c0_i32_1 = arith.constant 0 : i32
    return %c0_i32, %c0_i32_0 : i32, i32
  }
  func.func @transform_7(%arg0: i32) -> (i32, i32) {
    %c0_i32 = arith.constant 0 : i32
    %c0_i32_0 = arith.constant 0 : i32
    return %arg0, %c0_i32 : i32, i32
  }
}

</mosaic_0001>

<llo_original>
// kernel: encoder_forward.1
$region0: #{encoder_forward.1}
  #allocation0 [shape = 'u32[]', space=smem, size = 0x4, offset = 0x4, fixed_abs, tag = 'smem constant byte address 0x4 - core index']
  #allocation1 [shape = 'u32[72,128]{1,0:T(1,128)}', space=vmem, size = 0x9000, scoped, tag = 'internal scratch']
  %s0 = inlined_call_operand.vmem [shape: f32[8,256], index: 0, kind: input, shape index: {}]
  %s1 = inlined_call_operand.hbm [shape: f32[256,128], index: 1, kind: input, shape index: {}]
  %s2 = inlined_call_operand.vmem [shape: f32[1,128], index: 2, kind: input, shape index: {}]
  %s3 = inlined_call_operand.vmem [shape: f32[128,64], index: 3, kind: input, shape index: {}]
  %s4 = inlined_call_operand.vmem [shape: f32[1,64], index: 4, kind: input, shape index: {}]
  %s5 = inlined_call_operand.vmem [shape: f32[64,128], index: 5, kind: input, shape index: {}]
  %s6 = inlined_call_operand.vmem [shape: f32[1,128], index: 6, kind: input, shape index: {}]
  %s7 = inlined_call_operand.vmem [shape: f32[8,128], index: 7, kind: output, shape index: {}]
  %s8 = sld [smem:[#allocation0]]
  $region42: #{encoder_forward.1} parent=0
    _
  %s10 = ssub.s32 1, %s8
  %s11 = scalar_select 0, %s10, %s8
  $region1: #{encoder_forward.1} parent=0
    #allocation2 [shape = 'u8[131072]{0}', space=vmem, size = 0x20000, scoped, tag = 'input window, operand 1, single buffered']
    #allocation3 [shape = 's32[1]{0}', space=sflag, size = 0x4, scoped, tag = 'scoped memory for encoder_forward.1']
    %12 = vsyncpa [#allocation3], 0
    // Predicated region
    $region2: #{encoder_forward.1} parent=1 // pred_check
      _
    $region3: #{encoder_forward.1} parent=1 // pred_check_branch
      %14 = sbr.rel (0) target = $region5
    $region4: #{encoder_forward.1} parent=1 // pred_region
      _
    $region5: #{encoder_forward.1} parent=1 // pred_fallthru
      _
    // Predicated region
    $region6: #{encoder_forward.1} parent=1 // pred_check
      _
    $region7: #{encoder_forward.1} parent=1 // pred_check_branch
      %16 = sbr.rel (0) target = $region9
    $region8: #{encoder_forward.1} parent=1 // pred_region
      %18 = vsyncadd [#allocation3], 0
      %s19 = sshll.u32 %s1, 4
      %s20 = int_to_ptr.hbm [resolvable:$true] %s19
      %s21 = sshll.u32 [#allocation2], 4
      %s22 = int_to_ptr.vmem [resolvable:$true] %s21
      %27 = dma.hbm_to_vmem [thread:$0]  %s20, 4096, %s22, [#allocation3], 128, 128, 8
    $region9: #{encoder_forward.1} parent=1 // pred_fallthru
      _
    // Predicated region
    $region10: #{encoder_forward.1} parent=1 // pred_check
      _
    $region11: #{encoder_forward.1} parent=1 // pred_check_branch
      %29 = sbr.rel (0) target = $region13
    $region12: #{encoder_forward.1} parent=1 // pred_region
      _
    $region13: #{encoder_forward.1} parent=1 // pred_fallthru
      _
    // Predicated region
    $region14: #{encoder_forward.1} parent=1 // pred_check
      _
    $region15: #{encoder_forward.1} parent=1 // pred_check_branch
      %31 = sbr.rel (0) target = $region17
    $region16: #{encoder_forward.1} parent=1 // pred_region
      _
    $region17: #{encoder_forward.1} parent=1 // pred_fallthru
      _
    // Predicated region
    $region18: #{encoder_forward.1} parent=1 // pred_check
      _
    $region19: #{encoder_forward.1} parent=1 // pred_check_branch
      %33 = sbr.rel (0) target = $region21
    $region20: #{encoder_forward.1} parent=1 // pred_region
      _
    $region21: #{encoder_forward.1} parent=1 // pred_fallthru
      _
    // Predicated region
    $region22: #{encoder_forward.1} parent=1 // pred_check
      _
    $region23: #{encoder_forward.1} parent=1 // pred_check_branch
      %35 = sbr.rel (0) target = $region25
    $region24: #{encoder_forward.1} parent=1 // pred_region
      _
    $region25: #{encoder_forward.1} parent=1 // pred_fallthru
      _
    // Predicated region
    $region26: #{encoder_forward.1} parent=1 // pred_check
      _
    $region27: #{encoder_forward.1} parent=1 // pred_check_branch
      %37 = sbr.rel (0) target = $region29
    $region28: #{encoder_forward.1} parent=1 // pred_region
      _
    $region29: #{encoder_forward.1} parent=1 // pred_fallthru
      _
    // Predicated region
    $region30: #{encoder_forward.1} parent=1 // pred_check
      _
    $region31: #{encoder_forward.1} parent=1 // pred_check_branch
      %39 = sbr.rel (0) target = $region33
    $region32: #{encoder_forward.1} parent=1 // pred_region
      %41 = dma.done [#allocation3], 4096
    $region33: #{encoder_forward.1} parent=1 // pred_fallthru
      _
    %v42 = vld [vmem:[%s0] sm:$0xff]
    %v43 = vld [vmem:[%s0 + $0x8] sm:$0xff]
    %v44 = vld [vmem:[#allocation2] sm:$0xff]
    %v45 = vld [vmem:[#allocation2 + $0x8] sm:$0xff]
    %v46 = vld [vmem:[#allocation2 + $0x10] sm:$0xff]
    %v47 = vld [vmem:[#allocation2 + $0x18] sm:$0xff]
    %v48 = vld [vmem:[#allocation2 + $0x20] sm:$0xff]
    %v49 = vld [vmem:[#allocation2 + $0x28] sm:$0xff]
    %v50 = vld [vmem:[#allocation2 + $0x30] sm:$0xff]
    %v51 = vld [vmem:[#allocation2 + $0x38] sm:$0xff]
    %v52 = vld [vmem:[#allocation2 + $0x40] sm:$0xff]
    %v53 = vld [vmem:[#allocation2 + $0x48] sm:$0xff]
    %v54 = vld [vmem:[#allocation2 + $0x50] sm:$0xff]
    %v55 = vld [vmem:[#allocation2 + $0x58] sm:$0xff]
    %v56 = vld [vmem:[#allocation2 + $0x60] sm:$0xff]
    %v57 = vld [vmem:[#allocation2 + $0x68] sm:$0xff]
    %v58 = vld [vmem:[#allocation2 + $0x70] sm:$0xff]
    %v59 = vld [vmem:[#allocation2 + $0x78] sm:$0xff]
    %v60 = vld [vmem:[#allocation2 + $0x80] sm:$0xff]
    %v61 = vld [vmem:[#allocation2 + $0x88] sm:$0xff]
    %v62 = vld [vmem:[#allocation2 + $0x90] sm:$0xff]
    %v63 = vld [vmem:[#allocation2 + $0x98] sm:$0xff]
    %v64 = vld [vmem:[#allocation2 + $0xa0] sm:$0xff]
    %v65 = vld [vmem:[#allocation2 + $0xa8] sm:$0xff]
    %v66 = vld [vmem:[#allocation2 + $0xb0] sm:$0xff]
    %v67 = vld [vmem:[#allocation2 + $0xb8] sm:$0xff]
    %v68 = vld [vmem:[#allocation2 + $0xc0] sm:$0xff]
    %v69 = vld [vmem:[#allocation2 + $0xc8] sm:$0xff]
    %v70 = vld [vmem:[#allocation2 + $0xd0] sm:$0xff]
    %v71 = vld [vmem:[#allocation2 + $0xd8] sm:$0xff]
    %v72 = vld [vmem:[#allocation2 + $0xe0] sm:$0xff]
    %v73 = vld [vmem:[#allocation2 + $0xe8] sm:$0xff]
    %v74 = vld [vmem:[#allocation2 + $0xf0] sm:$0xff]
    %v75 = vld [vmem:[#allocation2 + $0xf8] sm:$0xff]
    %v76 = vld [vmem:[%s2] sm:$0x1]
    %v78 = vperm.slane %v76, 0
    %80 = vmatpush.msra.mxu0 %v59
    %81 = vmatpush.msra.mxu0 %v58
    %82 = vmatpush.msra.mxu0 %v57
    %83 = vmatpush.msra.mxu0 %v56
    %84 = vmatpush.msra.mxu0 %v55
    %85 = vmatpush.msra.mxu0 %v54
    %86 = vmatpush.msra.mxu0 %v53
    %87 = vmatpush.msra.mxu0 %v52
    %88 = vmatpush.msra.mxu0 %v51
    %89 = vmatpush.msra.mxu0 %v50
    %90 = vmatpush.msra.mxu0 %v49
    %91 = vmatpush.msra.mxu0 %v48
    %92 = vmatpush.msra.mxu0 %v47
    %93 = vmatpush.msra.mxu0 %v46
    %94 = vmatpush.msra.mxu0 %v45
    %95 = vmatpush.msra.mxu0 %v44
    %96 = vmatmul.f32.gmra.mxu0 %v42
    %v97 = vpop.f32.mrf.mxu0
    %v98 = vadd.f32 %v78, %v97
    %99 = vdwg.mxu0
    %100 = vmatpush.msra.mxu0 %v75
    %101 = vmatpush.msra.mxu0 %v74
    %102 = vmatpush.msra.mxu0 %v73
    %103 = vmatpush.msra.mxu0 %v72
    %104 = vmatpush.msra.mxu0 %v71
    %105 = vmatpush.msra.mxu0 %v70
    %106 = vmatpush.msra.mxu0 %v69
    %107 = vmatpush.msra.mxu0 %v68
    %108 = vmatpush.msra.mxu0 %v67
    %109 = vmatpush.msra.mxu0 %v66
    %110 = vmatpush.msra.mxu0 %v65
    %111 = vmatpush.msra.mxu0 %v64
    %112 = vmatpush.msra.mxu0 %v63
    %113 = vmatpush.msra.mxu0 %v62
    %114 = vmatpush.msra.mxu0 %v61
    %115 = vmatpush.msra.mxu0 %v60
    %116 = vmatmul.f32.gmra.mxu0 %v43
    %v117 = vpop.f32.mrf.mxu0
    %v118 = vadd.f32 %v98, %v117
    %119 = vdwg.mxu0
    %v120 = vmax.f32 %v118, 0.0
    %v121 = vld [vmem:[%s3] sm:$0xff]
    %v122 = vld [vmem:[%s3 + $0x8] sm:$0xff]
    %v123 = vld [vmem:[%s3 + $0x10] sm:$0xff]
    %v124 = vld [vmem:[%s3 + $0x18] sm:$0xff]
    %v125 = vld [vmem:[%s3 + $0x20] sm:$0xff]
    %v126 = vld [vmem:[%s3 + $0x28] sm:$0xff]
    %v127 = vld [vmem:[%s3 + $0x30] sm:$0xff]
    %v128 = vld [vmem:[%s3 + $0x38] sm:$0xff]
    %v129 = vld [vmem:[%s3 + $0x40] sm:$0xff]
    %v130 = vld [vmem:[%s3 + $0x48] sm:$0xff]
    %v131 = vld [vmem:[%s3 + $0x50] sm:$0xff]
    %v132 = vld [vmem:[%s3 + $0x58] sm:$0xff]
    %v133 = vld [vmem:[%s3 + $0x60] sm:$0xff]
    %v134 = vld [vmem:[%s3 + $0x68] sm:$0xff]
    %v135 = vld [vmem:[%s3 + $0x70] sm:$0xff]
    %v136 = vld [vmem:[%s3 + $0x78] sm:$0xff]
    %v137 = vld [vmem:[%s4] sm:$0x1]
    %v139 = vperm.slane %v137, 0
    %141 = vmatpush.msra.mxu0 %v136
    %142 = vmatpush.msra.mxu0 %v135
    %143 = vmatpush.msra.mxu0 %v134
    %144 = vmatpush.msra.mxu0 %v133
    %145 = vmatpush.msra.mxu0 %v132
    %146 = vmatpush.msra.mxu0 %v131
    %147 = vmatpush.msra.mxu0 %v130
    %148 = vmatpush.msra.mxu0 %v129
    %149 = vmatpush.msra.mxu0 %v128
    %150 = vmatpush.msra.mxu0 %v127
    %151 = vmatpush.msra.mxu0 %v126
    %152 = vmatpush.msra.mxu0 %v125
    %153 = vmatpush.msra.mxu0 %v124
    %154 = vmatpush.msra.mxu0 %v123
    %155 = vmatpush.msra.mxu0 %v122
    %156 = vmatpush.msra.mxu0 %v121
    %157 = vmatmul.f32.gmra.mxu0 %v120
    %v158 = vpop.f32.mrf.mxu0
    %v159 = vadd.f32 %v139, %v158
    %160 = vdwg.mxu0
    %v161 = vmax.f32 %v159, 0.0
    %v162 = vld [vmem:[%s5] sm:$0xff]
    %v163 = vld [vmem:[%s5 + $0x8] sm:$0xff]
    %v164 = vld [vmem:[%s5 + $0x10] sm:$0xff]
    %v165 = vld [vmem:[%s5 + $0x18] sm:$0xff]
    %v166 = vld [vmem:[%s5 + $0x20] sm:$0xff]
    %v167 = vld [vmem:[%s5 + $0x28] sm:$0xff]
    %v168 = vld [vmem:[%s5 + $0x30] sm:$0xff]
    %v169 = vld [vmem:[%s5 + $0x38] sm:$0xff]
    %v170 = vld [vmem:[%s6] sm:$0x1]
    %v172 = vperm.slane %v170, 0
    %vm174 = vcmask 523264
    %v176 = vsel %vm174, %v161, 0
    %178 = vmatpush.msra.mxu0 0.0
    %179 = vmatpush.msra.mxu0 0.0
    %180 = vmatpush.msra.mxu0 0.0
    %181 = vmatpush.msra.mxu0 0.0
    %182 = vmatpush.msra.mxu0 0.0
    %183 = vmatpush.msra.mxu0 0.0
    %184 = vmatpush.msra.mxu0 0.0
    %185 = vmatpush.msra.mxu0 0.0
    %186 = vmatpush.msra.mxu0 %v169
    %187 = vmatpush.msra.mxu0 %v168
    %188 = vmatpush.msra.mxu0 %v167
    %189 = vmatpush.msra.mxu0 %v166
    %190 = vmatpush.msra.mxu0 %v165
    %191 = vmatpush.msra.mxu0 %v164
    %192 = vmatpush.msra.mxu0 %v163
    %193 = vmatpush.msra.mxu0 %v162
    %194 = vmatmul.f32.gmra.mxu0 %v176
    %v195 = vpop.f32.mrf.mxu0
    %v196 = vadd.f32 %v172, %v195
    %197 = vdwg.mxu0
    %198 = vst [vmem:[%s7] sm:$0xff] %v196
    // Predicated region
    $region34: #{encoder_forward.1} parent=1 // pred_check
      _
    $region35: #{encoder_forward.1} parent=1 // pred_check_branch
      %200 = sbr.rel (0) target = $region37
    $region36: #{encoder_forward.1} parent=1 // pred_region
      _
    $region37: #{encoder_forward.1} parent=1 // pred_fallthru
      _
    // Predicated region
    $region38: #{encoder_forward.1} parent=1 // pred_check
      _
    $region39: #{encoder_forward.1} parent=1 // pred_check_branch
      %202 = sbr.rel (0) target = $region41
    $region40: #{encoder_forward.1} parent=1 // pred_region
      _
    $region41: #{encoder_forward.1} parent=1 // pred_fallthru
      _
    %203 = vsyncpa [#allocation3], 1

</llo_original>
